<compile_context>
chip_gen: v6e
topology: v6e:2x2x1
jax: 0.10.0
libtpu: 0.0.40
codegen_flags: <defaults>
</compile_context>

<pallas_src>
import functools
from typing import NamedTuple

import jax
import jax.numpy as jnp
from jax.experimental import pallas as pl
from jax.experimental.pallas import tpu as pltpu


# ----------------------------------------------------------------------------
# Activation (matches torch get_activation)
# ----------------------------------------------------------------------------
def _activation_fn(name: str):
    name = name.lower()
    if name == "tanh":
        return jnp.tanh
    if name == "relu":
        return lambda v: jnp.maximum(v, 0.0)
    if name == "softplus":
        return lambda v: jnp.logaddexp(v, 0.0)
    raise ValueError(f"Unsupported activation: {name}")


def _round_up(n: int, m: int) -> int:
    return ((n + m - 1) // m) * m


# ----------------------------------------------------------------------------
# One-time parameter packing (outside the per-call hot path)
# ----------------------------------------------------------------------------
class PackedPINN(NamedTuple):
    w0: jax.Array   # (P, IN_P)         float32  (layer 0 stays f32 for input precision)
    b0: jax.Array   # (P, 1)            float32
    wh: jax.Array   # (n_hidden, P, P)  matmul_dtype
    bh: jax.Array   # (n_hidden, P, 1)  float32
    wl: jax.Array   # (OUT_P, P)        matmul_dtype
    bl: jax.Array   # (OUT_P, 1)        float32
    input_dim: int
    out_dim: int


def pack_pinn_params(params, matmul_dtype=jnp.bfloat16) -> PackedPINN:
    """Pack PyTorch-layout params [(W:(out_f,in_f), b:(out_f,)), ...] into
    zero-padded MXU-ready slabs.  Zero padding is REQUIRED for correctness of
    the padded rows/cols (dead rows never feed real outputs)."""
    assert len(params) >= 3, "expected at least one hidden layer"
    (w0, b0) = params[0]
    hidden = params[1:-1]
    (wl, bl) = params[-1]

    hidden_dim, input_dim = w0.shape
    out_dim = wl.shape[0]
    for w, _ in hidden:
        assert w.shape == (hidden_dim, hidden_dim)

    P = _round_up(hidden_dim, 8)
    IN_P = _round_up(input_dim, 8)
    OUT_P = _round_up(out_dim, 8)

    w0_s = jnp.pad(jnp.asarray(w0, jnp.float32),
                   ((0, P - hidden_dim), (0, IN_P - input_dim)))
    b0_s = jnp.pad(jnp.asarray(b0, jnp.float32).reshape(-1, 1),
                   ((0, P - hidden_dim), (0, 0)))
    wh_s = jnp.stack([
        jnp.pad(jnp.asarray(w).astype(matmul_dtype),
                ((0, P - hidden_dim), (0, P - hidden_dim)))
        for w, _ in hidden])
    bh_s = jnp.stack([
        jnp.pad(jnp.asarray(b, jnp.float32).reshape(-1, 1),
                ((0, P - hidden_dim), (0, 0)))
        for _, b in hidden])
    wl_s = jnp.pad(jnp.asarray(wl).astype(matmul_dtype),
                   ((0, OUT_P - out_dim), (0, P - hidden_dim)))
    bl_s = jnp.pad(jnp.asarray(bl, jnp.float32).reshape(-1, 1),
                   ((0, OUT_P - out_dim), (0, 0)))

    return PackedPINN(w0_s, b0_s, wh_s, bh_s, wl_s, bl_s, input_dim, out_dim)


# ----------------------------------------------------------------------------
# Kernel: fused MLP forward for one batch tile (feature-major layout)
# ----------------------------------------------------------------------------
def _pinn_kernel(x_ref, w0_ref, b0_ref, wh_ref, bh_ref, wl_ref, bl_ref, out_ref,
                 *, n_hidden: int, out_dim: int, activation: str, act_dtype):
    """x_ref:  (IN_P, bt) f32          -- batch on lanes, features zero-padded
       w0_ref: (P, IN_P)  f32          b0_ref: (P, 1) f32
       wh_ref: (n_hidden, P, P) mm_dt  bh_ref: (n_hidden, P, 1) f32
       wl_ref: (OUT_P, P) mm_dt        bl_ref: (OUT_P, 1) f32
       out_ref:(out_dim, bt)
    """
    act = _activation_fn(activation)
    mm_dtype = wh_ref.dtype   # slabs are pre-cast; no per-step weight casts

    # Layer 0 entirely in f32 (K = input_dim is tiny; preserves input precision).
    h = jnp.dot(w0_ref[...], x_ref[...],
                preferred_element_type=jnp.float32) + b0_ref[...]
    h = act(h.astype(act_dtype)).astype(mm_dtype)

    # Hidden layers: mm_dtype operands, f32 MXU accumulation, f32 bias add.
    for i in range(n_hidden):
        h = jnp.dot(wh_ref[i], h,
                    preferred_element_type=jnp.float32) + bh_ref[i]
        h = act(h.astype(act_dtype)).astype(mm_dtype)

    # Final layer: tiny (OUT_P, P) slab -> minimal dead rows; lane-dense store.
    o = jnp.dot(wl_ref[...], h,
                preferred_element_type=jnp.float32) + bl_ref[...]
    out_ref[...] = o[:out_dim, :].astype(out_ref.dtype)


# ----------------------------------------------------------------------------
# Wrapper
# ----------------------------------------------------------------------------
def pinn_forward(x, packed: PackedPINN, *, activation: str = "tanh",
                 batch_tile: int = 2048, act_dtype=jnp.float32,
                 vmem_limit_bytes: int = 32 * 1024 * 1024,
                 x_is_feature_major: bool = False):
    """Fused PINN MLP forward.

    x:       (B, input_dim) -- or (input_dim, B) if x_is_feature_major=True,
             which avoids the wrapper-side transpose entirely.
    packed:  result of pack_pinn_params (pack ONCE, reuse across calls).
    Returns: (B, out_dim)   -- or (out_dim, B) if x_is_feature_major=True.
    """
    if x_is_feature_major:
        input_dim, B = x.shape
    else:
        B, input_dim = x.shape
    assert input_dim == packed.input_dim

    n_hidden = packed.wh.shape[0]
    out_dim = packed.out_dim
    P, IN_P = packed.w0.shape
    OUT_P = packed.wl.shape[0]

    # --- batch tiling: lane-dense (multiple of 128); prefer grid >= 2 so the
    #     "parallel" axis shards across both v7x TensorCores.
    assert batch_tile % 128 == 0, "batch_tile must be a multiple of 128"
    b_rounded = _round_up(B, 128)
    bt = min(batch_tile, b_rounded)
    if b_rounded // bt < 2 and b_rounded >= 256:
        bt = min(bt, _round_up(b_rounded // 2, 128))
    B_pad = _round_up(B, bt)
    grid = (B_pad // bt,)

    # Feature-major input, features zero-padded to IN_P, batch padded to B_pad.
    # TODO(synk): for large-B production use, have the producer emit x already
    # feature-major to avoid this extra HBM read+write of x per call.
    x_t = x.astype(jnp.float32) if x_is_feature_major else x.T.astype(jnp.float32)
    x_t = jnp.pad(x_t, ((0, IN_P - input_dim), (0, B_pad - B)))

    kernel = functools.partial(
        _pinn_kernel, n_hidden=n_hidden, out_dim=out_dim,
        activation=activation, act_dtype=act_dtype)

    out_t = pl.pallas_call(
        kernel,
        out_shape=jax.ShapeDtypeStruct((out_dim, B_pad), x.dtype),
        grid_spec=pltpu.PrefetchScalarGridSpec(
            num_scalar_prefetch=0,
            grid=grid,
            in_specs=[
                pl.BlockSpec((IN_P, bt), lambda i: (0, i)),
                # Grid-invariant slabs (constant index_map -> fetched once).
                pl.BlockSpec((P, IN_P), lambda i: (0, 0)),
                pl.BlockSpec((P, 1), lambda i: (0, 0)),
                pl.BlockSpec((n_hidden, P, P), lambda i: (0, 0, 0)),
                pl.BlockSpec((n_hidden, P, 1), lambda i: (0, 0, 0)),
                pl.BlockSpec((OUT_P, P), lambda i: (0, 0)),
                pl.BlockSpec((OUT_P, 1), lambda i: (0, 0)),
            ],
            out_specs=pl.BlockSpec((out_dim, bt), lambda i: (0, i)),
        ),
        compiler_params=pltpu.CompilerParams(
            dimension_semantics=("parallel",),   # megacore-shardable on v7x
            vmem_limit_bytes=vmem_limit_bytes,   # 32 MiB: safe on v5e/v6e/v7x
        ),
    )(x_t, packed.w0, packed.b0, packed.wh, packed.bh, packed.wl, packed.bl)

    out_t = out_t[:, :B]
    return out_t if x_is_feature_major else out_t.T


# ----------------------------------------------------------------------------
# Deterministic parameter init (mirrors nn.Linear: U(-k, k), k = 1/sqrt(fan_in))
# Weights kept in PyTorch layout: W (out_f, in_f), b (out_f,)
# ----------------------------------------------------------------------------
def init_pinn_params(key, input_dim, hidden_dim, output_dim, n_hidden_layers):
    dims = [input_dim] + [hidden_dim] * (n_hidden_layers + 1) + [output_dim]
    params = []
    for in_f, out_f in zip(dims[:-1], dims[1:]):
        key, kw, kb = jax.random.split(key, 3)
        k = 1.0 / jnp.sqrt(jnp.float32(in_f))
        w = jax.random.uniform(kw, (out_f, in_f), jnp.float32, minval=-k, maxval=k)
        b = jax.random.uniform(kb, (out_f,), jnp.float32, minval=-k, maxval=k)
        params.append((w, b))
    return params


def pinn_reference(x, params, activation: str = "tanh"):
    """Pure-JAX reference (nn.Linear semantics) for correctness checking."""
    act = _activation_fn(activation)
    h = x
    for i, (w, b) in enumerate(params):
        h = h @ w.T + b
        if i < len(params) - 1:
            h = act(h)
    return h


# ----------------------------------------------------------------------------
# Main
# ----------------------------------------------------------------------------
if __name__ == "__main__":
    # input_dim = 1 (time) + 1 (wealth) + 2 (latent states) = 4
    batch = 256
    input_dim = 4
    hidden_dim = 64
    output_dim = 1
    n_hidden_layers = 4
    activation = "tanh"

    key = jax.random.PRNGKey(0)
    key, kx = jax.random.split(key)
    x = jax.random.normal(kx, (batch, input_dim), dtype=jnp.float32)

    params = init_pinn_params(key, input_dim, hidden_dim, output_dim, n_hidden_layers)
    ref = pinn_reference(x, params, activation=activation)

    # f32 path.  Tile chooser picks bt=128, grid=2 (exercises pipeline + megacore).
    packed_f32 = pack_pinn_params(params, matmul_dtype=jnp.float32)
    out = jax.block_until_ready(pinn_forward(x, packed_f32, activation=activation))
    assert out.shape == (batch, output_dim)
    assert jnp.allclose(out, ref, atol=1e-4, rtol=1e-4), "f32 mismatch vs reference"

    # bf16 MXU operands (layer 0 stays f32), f32 activations -> safe on v5e too.
    packed_bf16 = pack_pinn_params(params, matmul_dtype=jnp.bfloat16)
    out_bf16 = jax.block_until_ready(
        pinn_forward(x, packed_bf16, activation=activation))
    assert jnp.allclose(out_bf16, ref, atol=5e-2, rtol=5e-2), "bf16 mismatch vs reference"

    # bf16 activations as well (recommended on v6e / v7x: bf16 EUP, no extra cast).
    out_bf16_act = jax.block_until_ready(
        pinn_forward(x, packed_bf16, activation=activation, act_dtype=jnp.bfloat16))
    assert jnp.allclose(out_bf16_act, ref, atol=5e-2, rtol=5e-2), \
        "bf16-activation mismatch vs reference"

    print("KERNEL_OK")
</pallas_src>

<mosaic_0001>
module attributes {stable_mosaic.version = 11 : i64} {
  func.func @_pinn_kernel(%arg0: i32, %arg1: memref<8x128xf32, #tpu.memory_space<vmem>>, %arg2: memref<64x8xf32, #tpu.memory_space<vmem>>, %arg3: memref<64x1xf32, #tpu.memory_space<vmem>>, %arg4: memref<4x64x64xf32, #tpu.memory_space<vmem>>, %arg5: memref<4x64x1xf32, #tpu.memory_space<vmem>>, %arg6: memref<8x64xf32, #tpu.memory_space<vmem>>, %arg7: memref<8x1xf32, #tpu.memory_space<vmem>>, %arg8: memref<1x128xf32, #tpu.memory_space<vmem>>) attributes {dimension_semantics = [#tpu.dimension_semantics<parallel>], iteration_bounds = array<i64: 2>, scalar_prefetch = 0 : i64, scratch_operands = 0 : i64, tpu.core_type = #tpu.core_type<tc>, window_params = [{transform_indices = @transform_0, window_bounds = array<i64: 8, 128>}, {pipeline_mode = #tpu.pipeline_mode<synchronous>, transform_indices = @transform_1, window_bounds = array<i64: 64, 8>}, {pipeline_mode = #tpu.pipeline_mode<synchronous>, transform_indices = @transform_2, window_bounds = array<i64: 64, 1>}, {pipeline_mode = #tpu.pipeline_mode<synchronous>, transform_indices = @transform_3, window_bounds = array<i64: 4, 64, 64>}, {pipeline_mode = #tpu.pipeline_mode<synchronous>, transform_indices = @transform_4, window_bounds = array<i64: 4, 64, 1>}, {pipeline_mode = #tpu.pipeline_mode<synchronous>, transform_indices = @transform_5, window_bounds = array<i64: 8, 64>}, {pipeline_mode = #tpu.pipeline_mode<synchronous>, transform_indices = @transform_6, window_bounds = array<i64: 8, 1>}, {transform_indices = @transform_7, window_bounds = array<i64: 1, 128>}]} {
    %c0 = arith.constant 0 : index
    %c0_0 = arith.constant 0 : index
    %0 = vector.load %arg2[%c0, %c0_0] : memref<64x8xf32, #tpu.memory_space<vmem>>, vector<64x8xf32>
    %c0_1 = arith.constant 0 : index
    %c0_2 = arith.constant 0 : index
    %1 = vector.load %arg1[%c0_1, %c0_2] : memref<8x128xf32, #tpu.memory_space<vmem>>, vector<8x128xf32>
    %cst = arith.constant dense<0.000000e+00> : vector<64x128xf32>
    %2 = tpu.matmul %0, %1, %cst {dimension_numbers = #tpu.dot_dimension_numbers<[1], [0], [0], [1], [0, 0, 1, 1], [], []>} : vector<64x8xf32>, vector<8x128xf32>, vector<64x128xf32> -> vector<64x128xf32>
    %c0_3 = arith.constant 0 : index
    %c0_4 = arith.constant 0 : index
    %3 = vector.load %arg3[%c0_3, %c0_4] : memref<64x1xf32, #tpu.memory_space<vmem>>, vector<64x1xf32>
    %4 = vector.broadcast %3 : vector<64x1xf32> to vector<64x128xf32>
    %5 = arith.addf %2, %4 : vector<64x128xf32>
    %6 = math.tanh %5 : vector<64x128xf32>
    %c0_5 = arith.constant 0 : index
    %c0_6 = arith.constant 0 : index
    %c0_7 = arith.constant 0 : index
    %7 = vector.load %arg4[%c0_5, %c0_6, %c0_7] : memref<4x64x64xf32, #tpu.memory_space<vmem>>, vector<1x64x64xf32>
    %8 = vector.shape_cast %7 : vector<1x64x64xf32> to vector<64x64xf32>
    %cst_8 = arith.constant dense<0.000000e+00> : vector<64x128xf32>
    %9 = tpu.matmul %8, %6, %cst_8 {dimension_numbers = #tpu.dot_dimension_numbers<[1], [0], [0], [1], [0, 0, 1, 1], [], []>} : vector<64x64xf32>, vector<64x128xf32>, vector<64x128xf32> -> vector<64x128xf32>
    %c0_9 = arith.constant 0 : index
    %c0_10 = arith.constant 0 : index
    %c0_11 = arith.constant 0 : index
    %10 = vector.load %arg5[%c0_9, %c0_10, %c0_11] : memref<4x64x1xf32, #tpu.memory_space<vmem>>, vector<1x64x1xf32>
    %11 = vector.shape_cast %10 : vector<1x64x1xf32> to vector<64x1xf32>
    %12 = vector.broadcast %11 : vector<64x1xf32> to vector<64x128xf32>
    %13 = arith.addf %9, %12 : vector<64x128xf32>
    %14 = math.tanh %13 : vector<64x128xf32>
    %c1 = arith.constant 1 : index
    %c0_12 = arith.constant 0 : index
    %c0_13 = arith.constant 0 : index
    %15 = vector.load %arg4[%c1, %c0_12, %c0_13] : memref<4x64x64xf32, #tpu.memory_space<vmem>>, vector<1x64x64xf32>
    %16 = vector.shape_cast %15 : vector<1x64x64xf32> to vector<64x64xf32>
    %cst_14 = arith.constant dense<0.000000e+00> : vector<64x128xf32>
    %17 = tpu.matmul %16, %14, %cst_14 {dimension_numbers = #tpu.dot_dimension_numbers<[1], [0], [0], [1], [0, 0, 1, 1], [], []>} : vector<64x64xf32>, vector<64x128xf32>, vector<64x128xf32> -> vector<64x128xf32>
    %c1_15 = arith.constant 1 : index
    %c0_16 = arith.constant 0 : index
    %c0_17 = arith.constant 0 : index
    %18 = vector.load %arg5[%c1_15, %c0_16, %c0_17] : memref<4x64x1xf32, #tpu.memory_space<vmem>>, vector<1x64x1xf32>
    %19 = vector.shape_cast %18 : vector<1x64x1xf32> to vector<64x1xf32>
    %20 = vector.broadcast %19 : vector<64x1xf32> to vector<64x128xf32>
    %21 = arith.addf %17, %20 : vector<64x128xf32>
    %22 = math.tanh %21 : vector<64x128xf32>
    %c2 = arith.constant 2 : index
    %c0_18 = arith.constant 0 : index
    %c0_19 = arith.constant 0 : index
    %23 = vector.load %arg4[%c2, %c0_18, %c0_19] : memref<4x64x64xf32, #tpu.memory_space<vmem>>, vector<1x64x64xf32>
    %24 = vector.shape_cast %23 : vector<1x64x64xf32> to vector<64x64xf32>
    %cst_20 = arith.constant dense<0.000000e+00> : vector<64x128xf32>
    %25 = tpu.matmul %24, %22, %cst_20 {dimension_numbers = #tpu.dot_dimension_numbers<[1], [0], [0], [1], [0, 0, 1, 1], [], []>} : vector<64x64xf32>, vector<64x128xf32>, vector<64x128xf32> -> vector<64x128xf32>
    %c2_21 = arith.constant 2 : index
    %c0_22 = arith.constant 0 : index
    %c0_23 = arith.constant 0 : index
    %26 = vector.load %arg5[%c2_21, %c0_22, %c0_23] : memref<4x64x1xf32, #tpu.memory_space<vmem>>, vector<1x64x1xf32>
    %27 = vector.shape_cast %26 : vector<1x64x1xf32> to vector<64x1xf32>
    %28 = vector.broadcast %27 : vector<64x1xf32> to vector<64x128xf32>
    %29 = arith.addf %25, %28 : vector<64x128xf32>
    %30 = math.tanh %29 : vector<64x128xf32>
    %c3 = arith.constant 3 : index
    %c0_24 = arith.constant 0 : index
    %c0_25 = arith.constant 0 : index
    %31 = vector.load %arg4[%c3, %c0_24, %c0_25] : memref<4x64x64xf32, #tpu.memory_space<vmem>>, vector<1x64x64xf32>
    %32 = vector.shape_cast %31 : vector<1x64x64xf32> to vector<64x64xf32>
    %cst_26 = arith.constant dense<0.000000e+00> : vector<64x128xf32>
    %33 = tpu.matmul %32, %30, %cst_26 {dimension_numbers = #tpu.dot_dimension_numbers<[1], [0], [0], [1], [0, 0, 1, 1], [], []>} : vector<64x64xf32>, vector<64x128xf32>, vector<64x128xf32> -> vector<64x128xf32>
    %c3_27 = arith.constant 3 : index
    %c0_28 = arith.constant 0 : index
    %c0_29 = arith.constant 0 : index
    %34 = vector.load %arg5[%c3_27, %c0_28, %c0_29] : memref<4x64x1xf32, #tpu.memory_space<vmem>>, vector<1x64x1xf32>
    %35 = vector.shape_cast %34 : vector<1x64x1xf32> to vector<64x1xf32>
    %36 = vector.broadcast %35 : vector<64x1xf32> to vector<64x128xf32>
    %37 = arith.addf %33, %36 : vector<64x128xf32>
    %38 = math.tanh %37 : vector<64x128xf32>
    %c0_30 = arith.constant 0 : index
    %c0_31 = arith.constant 0 : index
    %39 = vector.load %arg6[%c0_30, %c0_31] : memref<8x64xf32, #tpu.memory_space<vmem>>, vector<8x64xf32>
    %cst_32 = arith.constant dense<0.000000e+00> : vector<8x128xf32>
    %40 = tpu.matmul %39, %38, %cst_32 {dimension_numbers = #tpu.dot_dimension_numbers<[1], [0], [0], [1], [0, 0, 1, 1], [], []>} : vector<8x64xf32>, vector<64x128xf32>, vector<8x128xf32> -> vector<8x128xf32>
    %c0_33 = arith.constant 0 : index
    %c0_34 = arith.constant 0 : index
    %41 = vector.load %arg7[%c0_33, %c0_34] : memref<8x1xf32, #tpu.memory_space<vmem>>, vector<8x1xf32>
    %42 = vector.broadcast %41 : vector<8x1xf32> to vector<8x128xf32>
    %43 = arith.addf %40, %42 : vector<8x128xf32>
    %44 = vector.extract_strided_slice %43 {offsets = [0, 0], sizes = [1, 128], strides = [1, 1]} : vector<8x128xf32> to vector<1x128xf32>
    %c0_35 = arith.constant 0 : index
    %c0_36 = arith.constant 0 : index
    %45 = vector.load %arg8[%c0_35, %c0_36] : memref<1x128xf32, #tpu.memory_space<vmem>>, vector<1x128xf32>
    tpu.vector_store %arg8[%c0_35, %c0_36], %44 {strides = array<i32>} : memref<1x128xf32, #tpu.memory_space<vmem>>, vector<1x128xf32>,
    return
  }
  func.func @transform_0(%arg0: i32) -> (i32, i32) {
    %c0_i32 = arith.constant 0 : i32
    %c0_i32_0 = arith.constant 0 : i32
    return %c0_i32, %arg0 : i32, i32
  }
  func.func @transform_1(%arg0: i32) -> (i32, i32) {
    %c0_i32 = arith.constant 0 : i32
    %c0_i32_0 = arith.constant 0 : i32
    %c0_i32_1 = arith.constant 0 : i32
    return %c0_i32, %c0_i32_0 : i32, i32
  }
  func.func @transform_2(%arg0: i32) -> (i32, i32) {
    %c0_i32 = arith.constant 0 : i32
    %c0_i32_0 = arith.constant 0 : i32
    %c0_i32_1 = arith.constant 0 : i32
    return %c0_i32, %c0_i32_0 : i32, i32
  }
  func.func @transform_3(%arg0: i32) -> (i32, i32, i32) {
    %c0_i32 = arith.constant 0 : i32
    %c0_i32_0 = arith.constant 0 : i32
    %c0_i32_1 = arith.constant 0 : i32
    %c0_i32_2 = arith.constant 0 : i32
    return %c0_i32, %c0_i32_0, %c0_i32_1 : i32, i32, i32
  }
  func.func @transform_4(%arg0: i32) -> (i32, i32, i32) {
    %c0_i32 = arith.constant 0 : i32
    %c0_i32_0 = arith.constant 0 : i32
    %c0_i32_1 = arith.constant 0 : i32
    %c0_i32_2 = arith.constant 0 : i32
    return %c0_i32, %c0_i32_0, %c0_i32_1 : i32, i32, i32
  }
  func.func @transform_5(%arg0: i32) -> (i32, i32) {
    %c0_i32 = arith.constant 0 : i32
    %c0_i32_0 = arith.constant 0 : i32
    %c0_i32_1 = arith.constant 0 : i32
    return %c0_i32, %c0_i32_0 : i32, i32
  }
  func.func @transform_6(%arg0: i32) -> (i32, i32) {
    %c0_i32 = arith.constant 0 : i32
    %c0_i32_0 = arith.constant 0 : i32
    %c0_i32_1 = arith.constant 0 : i32
    return %c0_i32, %c0_i32_0 : i32, i32
  }
  func.func @transform_7(%arg0: i32) -> (i32, i32) {
    %c0_i32 = arith.constant 0 : i32
    %c0_i32_0 = arith.constant 0 : i32
    return %c0_i32, %arg0 : i32, i32
  }
}

</mosaic_0001>

<llo_original>
// kernel: tpu_custom_call.1
$region0: #{tpu_custom_call.1}
  #allocation0 [shape = 'u32[]', space=smem, size = 0x4, offset = 0x4, fixed_abs, tag = 'smem constant byte address 0x4 - core index']
  #allocation1 [shape = 'u32[144,128]{1,0:T(1,128)}', space=vmem, size = 0x12000, scoped, tag = 'internal scratch']
  %s0 = inlined_call_operand.vmem [shape: f32[8,256], index: 0, kind: input, shape index: {}]
  %s1 = inlined_call_operand.vmem [shape: f32[64,8], index: 1, kind: input, shape index: {}]
  %s2 = inlined_call_operand.vmem [shape: f32[64,1], index: 2, kind: input, shape index: {}]
  %s3 = inlined_call_operand.vmem [shape: f32[4,64,64], index: 3, kind: input, shape index: {}]
  %s4 = inlined_call_operand.vmem [shape: f32[4,64,1], index: 4, kind: input, shape index: {}]
  %s5 = inlined_call_operand.vmem [shape: f32[8,64], index: 5, kind: input, shape index: {}]
  %s6 = inlined_call_operand.vmem [shape: f32[8,1], index: 6, kind: input, shape index: {}]
  %s7 = inlined_call_operand.hbm [shape: f32[1,256], index: 7, kind: output, shape index: {}]
  %s8 = sld [smem:[#allocation0]]
  $region61: #{tpu_custom_call.1} parent=0
    _
  %s10 = ssub.s32 1, %s8
  %s11 = scalar_select 0, %s10, %s8
  $region1: #{tpu_custom_call.1} parent=0
    #allocation2 [shape = 'u8[1024]{0}', space=vmem, size = 0x400, scoped, tag = 'output window, operand 0']
    #allocation3 [shape = 's32[2]{0}', space=sflag, size = 0x8, scoped, tag = 'scoped memory for tpu_custom_call.1']
    %12 = vsyncpa [#allocation3], 0
    %s13 = scalar_lea.sflag [#allocation3], 1
    %14 = vsyncpa %s13, 0
    loop: start=0, step=1, limit=4
    $region2: #{tpu_custom_call.1} parent=1 // loop_pre_header
      _
    $region3: #{tpu_custom_call.1} parent=1 // loop_header
      %s16 = sphi 0, %s20
      %p17 = scmp.ge.s32.totalorder %s16, 4
      %s26 = sphi 0, %s28
      %s29 = sphi 0, %s26
      %s30 = sphi 0, %s29
      %s46 = sphi 0, %s30
      %s50 = sphi 0, %s50
      %s52 = sphi 0, %s50
      %s53 = sphi 0, %s52
      %s67 = sphi 0, %s53
      %s71 = sphi 0, %s71
      %s73 = sphi 0, %s71
      %s74 = sphi 0, %s73
      %s88 = sphi 0, %s74
      %s92 = sphi 0, %s92
      %s94 = sphi 0, %s92
      %s95 = sphi 0, %s94
      %s109 = sphi 0, %s95
      %s113 = sphi 0, %s113
      %s115 = sphi 0, %s113
      %s116 = sphi 0, %s115
      %s130 = sphi 0, %s116
      %s134 = sphi 0, %s134
      %s136 = sphi 0, %s134
      %s137 = sphi 0, %s136
      %s151 = sphi 0, %s137
      %s155 = sphi 0, %s155
      %s157 = sphi 0, %s155
      %s158 = sphi 0, %s157
      %s172 = sphi 0, %s158
      %s178 = sphi 0, %s180
      %s181 = sphi 0, %s178
      %s182 = sphi 0, %s181
      %s198 = sphi 0, %s182
    $region4: #{tpu_custom_call.1} parent=1 // loop_header_branch
      %19 = sbr.rel (%p17) target = $region8
    $region5: #{tpu_custom_call.1} parent=1 // loop_body
      %s21 = ssub.s32 %s16, 1
      %s22 = ssub.s32 %s16, 2
      %s23 = sadd.s32 %s16, 1
      %s24 = ssub.s32 %s16, %s23
      %p25 = scmp.eq.s32.totalorder %s24, 0
      %s27 = sadd.s32 %s26, 1
      %s28 = scalar_select %p25, %s26, %s27
      %p31 = pneg %p25
      %p32 = scmp.eq.s32.totalorder %s16, 1
      %p33 = por %p31, %p32
      %p34 = scmp.ne.s32.totalorder %s26, %s29
      %p35 = scmp.eq.s32.totalorder %s16, 0
      %p36 = por %p34, %p35
      %p37 = scmp.ne.s32.totalorder %s26, %s29
      %p38 = scmp.eq.s32.totalorder %s21, 1
      %p39 = por %p37, %p38
      %p40 = scmp.ne.s32.totalorder %s29, %s30
      %p41 = scmp.eq.s32.totalorder %s21, 0
      %p42 = por %p40, %p41
      %p43 = scmp.ne.s32.totalorder %s29, %s30
      %p44 = scmp.eq.s32.totalorder %s22, 1
      %p45 = por %p43, %p44
      %p47 = scmp.ne.s32.totalorder %s30, %s46
      %p48 = scmp.eq.s32.totalorder %s22, 0
      %p49 = por %p47, %p48
      %s51 = sadd.s32 %s50, 1
      %p54 = scmp.eq.s32.totalorder %s16, 1
      %p55 = scmp.ne.s32.totalorder %s50, %s52
      %p56 = scmp.eq.s32.totalorder %s16, 0
      %p57 = por %p55, %p56
      %p58 = scmp.ne.s32.totalorder %s50, %s52
      %p59 = scmp.eq.s32.totalorder %s21, 1
      %p60 = por %p58, %p59
      %p61 = scmp.ne.s32.totalorder %s52, %s53
      %p62 = scmp.eq.s32.totalorder %s21, 0
      %p63 = por %p61, %p62
      %p64 = scmp.ne.s32.totalorder %s52, %s53
      %p65 = scmp.eq.s32.totalorder %s22, 1
      %p66 = por %p64, %p65
      %p68 = scmp.ne.s32.totalorder %s53, %s67
      %p69 = scmp.eq.s32.totalorder %s22, 0
      %p70 = por %p68, %p69
      %s72 = sadd.s32 %s71, 1
      %p75 = scmp.eq.s32.totalorder %s16, 1
      %p76 = scmp.ne.s32.totalorder %s71, %s73
      %p77 = scmp.eq.s32.totalorder %s16, 0
      %p78 = por %p76, %p77
      %p79 = scmp.ne.s32.totalorder %s71, %s73
      %p80 = scmp.eq.s32.totalorder %s21, 1
      %p81 = por %p79, %p80
      %p82 = scmp.ne.s32.totalorder %s73, %s74
      %p83 = scmp.eq.s32.totalorder %s21, 0
      %p84 = por %p82, %p83
      %p85 = scmp.ne.s32.totalorder %s73, %s74
      %p86 = scmp.eq.s32.totalorder %s22, 1
      %p87 = por %p85, %p86
      %p89 = scmp.ne.s32.totalorder %s74, %s88
      %p90 = scmp.eq.s32.totalorder %s22, 0
      %p91 = por %p89, %p90
      %s93 = sadd.s32 %s92, 1
      %p96 = scmp.eq.s32.totalorder %s16, 1
      %p97 = scmp.ne.s32.totalorder %s92, %s94
      %p98 = scmp.eq.s32.totalorder %s16, 0
      %p99 = por %p97, %p98
      %p100 = scmp.ne.s32.totalorder %s92, %s94
      %p101 = scmp.eq.s32.totalorder %s21, 1
      %p102 = por %p100, %p101
      %p103 = scmp.ne.s32.totalorder %s94, %s95
      %p104 = scmp.eq.s32.totalorder %s21, 0
      %p105 = por %p103, %p104
      %p106 = scmp.ne.s32.totalorder %s94, %s95
      %p107 = scmp.eq.s32.totalorder %s22, 1
      %p108 = por %p106, %p107
      %p110 = scmp.ne.s32.totalorder %s95, %s109
      %p111 = scmp.eq.s32.totalorder %s22, 0
      %p112 = por %p110, %p111
      %s114 = sadd.s32 %s113, 1
      %p117 = scmp.eq.s32.totalorder %s16, 1
      %p118 = scmp.ne.s32.totalorder %s113, %s115
      %p119 = scmp.eq.s32.totalorder %s16, 0
      %p120 = por %p118, %p119
      %p121 = scmp.ne.s32.totalorder %s113, %s115
      %p122 = scmp.eq.s32.totalorder %s21, 1
      %p123 = por %p121, %p122
      %p124 = scmp.ne.s32.totalorder %s115, %s116
      %p125 = scmp.eq.s32.totalorder %s21, 0
      %p126 = por %p124, %p125
      %p127 = scmp.ne.s32.totalorder %s115, %s116
      %p128 = scmp.eq.s32.totalorder %s22, 1
      %p129 = por %p127, %p128
      %p131 = scmp.ne.s32.totalorder %s116, %s130
      %p132 = scmp.eq.s32.totalorder %s22, 0
      %p133 = por %p131, %p132
      %s135 = sadd.s32 %s134, 1
      %p138 = scmp.eq.s32.totalorder %s16, 1
      %p139 = scmp.ne.s32.totalorder %s134, %s136
      %p140 = scmp.eq.s32.totalorder %s16, 0
      %p141 = por %p139, %p140
      %p142 = scmp.ne.s32.totalorder %s134, %s136
      %p143 = scmp.eq.s32.totalorder %s21, 1
      %p144 = por %p142, %p143
      %p145 = scmp.ne.s32.totalorder %s136, %s137
      %p146 = scmp.eq.s32.totalorder %s21, 0
      %p147 = por %p145, %p146
      %p148 = scmp.ne.s32.totalorder %s136, %s137
      %p149 = scmp.eq.s32.totalorder %s22, 1
      %p150 = por %p148, %p149
      %p152 = scmp.ne.s32.totalorder %s137, %s151
      %p153 = scmp.eq.s32.totalorder %s22, 0
      %p154 = por %p152, %p153
      %s156 = sadd.s32 %s155, 1
      %p159 = scmp.eq.s32.totalorder %s16, 1
      %p160 = scmp.ne.s32.totalorder %s155, %s157
      %p161 = scmp.eq.s32.totalorder %s16, 0
      %p162 = por %p160, %p161
      %p163 = scmp.ne.s32.totalorder %s155, %s157
      %p164 = scmp.eq.s32.totalorder %s21, 1
      %p165 = por %p163, %p164
      %p166 = scmp.ne.s32.totalorder %s157, %s158
      %p167 = scmp.eq.s32.totalorder %s21, 0
      %p168 = por %p166, %p167
      %p169 = scmp.ne.s32.totalorder %s157, %s158
      %p170 = scmp.eq.s32.totalorder %s22, 1
      %p171 = por %p169, %p170
      %p173 = scmp.ne.s32.totalorder %s158, %s172
      %p174 = scmp.eq.s32.totalorder %s22, 0
      %p175 = por %p173, %p174
      %s176 = ssub.s32 %s16, %s23
      %p177 = scmp.eq.s32.totalorder %s176, 0
      %s179 = sadd.s32 %s178, 1
      %s180 = scalar_select %p177, %s178, %s179
      %p183 = pneg %p177
      %p184 = scmp.eq.s32.totalorder %s16, 1
      %p185 = por %p183, %p184
      %p186 = scmp.ne.s32.totalorder %s178, %s181
      %p187 = scmp.eq.s32.totalorder %s16, 0
      %p188 = por %p186, %p187
      %p189 = scmp.ne.s32.totalorder %s178, %s181
      %p190 = scmp.eq.s32.totalorder %s21, 1
      %p191 = por %p189, %p190
      %p192 = scmp.ne.s32.totalorder %s181, %s182
      %p193 = scmp.eq.s32.totalorder %s21, 0
      %p194 = por %p192, %p193
      %p195 = scmp.ne.s32.totalorder %s181, %s182
      %p196 = scmp.eq.s32.totalorder %s22, 1
      %p197 = por %p195, %p196
      %p199 = scmp.ne.s32.totalorder %s182, %s198
      %p200 = scmp.eq.s32.totalorder %s22, 0
      %p201 = por %p199, %p200
      %p202 = scmp.le.s32.totalorder 1, %s16
      %p203 = scmp.lt.s32.totalorder %s16, 3
      %p204 = pnand %p202, %p203
      %p205 = pneg %p204
      // Predicated region
      $region9: #{tpu_custom_call.1} parent=5 // pred_check
        _
      $region10: #{tpu_custom_call.1} parent=5 // pred_check_branch
        %207 = sbr.rel (%p204) target = $region12
      $region11: #{tpu_custom_call.1} parent=5 // pred_region
        %s208 = ssub.s32 %s16, 1
        // Predicated region
        $region13: #{tpu_custom_call.1} parent=11 // pred_check
          %p209 = pneg %p63
        $region14: #{tpu_custom_call.1} parent=11 // pred_check_branch
          %211 = sbr.rel (%p209) target = $region16
        $region15: #{tpu_custom_call.1} parent=11 // pred_region
          _
        $region16: #{tpu_custom_call.1} parent=11 // pred_fallthru
          _
        // Predicated region
        $region17: #{tpu_custom_call.1} parent=11 // pred_check
          %p212 = pneg %p84
        $region18: #{tpu_custom_call.1} parent=11 // pred_check_branch
          %214 = sbr.rel (%p212) target = $region20
        $region19: #{tpu_custom_call.1} parent=11 // pred_region
          _
        $region20: #{tpu_custom_call.1} parent=11 // pred_fallthru
          _
        // Predicated region
        $region21: #{tpu_custom_call.1} parent=11 // pred_check
          %p215 = pneg %p105
        $region22: #{tpu_custom_call.1} parent=11 // pred_check_branch
          %217 = sbr.rel (%p215) target = $region24
        $region23: #{tpu_custom_call.1} parent=11 // pred_region
          _
        $region24: #{tpu_custom_call.1} parent=11 // pred_fallthru
          _
        // Predicated region
        $region25: #{tpu_custom_call.1} parent=11 // pred_check
          %p218 = pneg %p126
        $region26: #{tpu_custom_call.1} parent=11 // pred_check_branch
          %220 = sbr.rel (%p218) target = $region28
        $region27: #{tpu_custom_call.1} parent=11 // pred_region
          _
        $region28: #{tpu_custom_call.1} parent=11 // pred_fallthru
          _
        // Predicated region
        $region29: #{tpu_custom_call.1} parent=11 // pred_check
          %p221 = pneg %p147
        $region30: #{tpu_custom_call.1} parent=11 // pred_check_branch
          %223 = sbr.rel (%p221) target = $region32
        $region31: #{tpu_custom_call.1} parent=11 // pred_region
          _
        $region32: #{tpu_custom_call.1} parent=11 // pred_fallthru
          _
        // Predicated region
        $region33: #{tpu_custom_call.1} parent=11 // pred_check
          %p224 = pneg %p168
        $region34: #{tpu_custom_call.1} parent=11 // pred_check_branch
          %226 = sbr.rel (%p224) target = $region36
        $region35: #{tpu_custom_call.1} parent=11 // pred_region
          _
        $region36: #{tpu_custom_call.1} parent=11 // pred_fallthru
          _
      $region12: #{tpu_custom_call.1} parent=5 // pred_fallthru
        _
      %p227 = scmp.lt.s32.totalorder %s16, 2
      // Predicated region
      $region37: #{tpu_custom_call.1} parent=5 // pred_check
        %p228 = pneg %p227
      $region38: #{tpu_custom_call.1} parent=5 // pred_check_branch
        %230 = sbr.rel (%p228) target = $region40
      $region39: #{tpu_custom_call.1} parent=5 // pred_region
        // Predicated region
        $region41: #{tpu_custom_call.1} parent=39 // pred_check
          %p231 = pneg %p36
        $region42: #{tpu_custom_call.1} parent=39 // pred_check_branch
          %233 = sbr.rel (%p231) target = $region44
        $region43: #{tpu_custom_call.1} parent=39 // pred_region
          %p234 = scmp.lt.s32.totalorder %s16, 1
          %s235 = scalar_select %p234, %s16, 1
          %s236 = smul.addr %s235, 8
          %s237 = scalar_lea.vmem %s0, %s236
        $region44: #{tpu_custom_call.1} parent=39 // pred_fallthru
          _
      $region40: #{tpu_custom_call.1} parent=5 // pred_fallthru
        _
      %p238 = scmp.le.s32.totalorder 1, %s16
      %p239 = scmp.lt.s32.totalorder %s16, 3
      %p240 = pnand %p238, %p239
      %p241 = pneg %p240
      // Predicated region
      $region45: #{tpu_custom_call.1} parent=5 // pred_check
        _
      $region46: #{tpu_custom_call.1} parent=5 // pred_check_branch
        %243 = sbr.rel (%p240) target = $region48
      $region47: #{tpu_custom_call.1} parent=5 // pred_region
        %s244 = ssub.s32 %s16, 1
        %p245 = scmp.lt.s32.totalorder %s21, 1
        %s246 = scalar_select %p245, %s21, 1
        %s247 = smul.addr %s246, 8
        %s248 = scalar_lea.vmem %s0, %s247
        %p249 = pneg %p42
        %p250 = pneg %p39
        %p251 = pneg %p63
        %p252 = pneg %p60
        %p253 = pneg %p84
        %p254 = pneg %p81
        %p255 = pneg %p105
        %p256 = pneg %p102
        %p257 = pneg %p126
        %p258 = pneg %p123
        %p259 = pneg %p147
        %p260 = pneg %p144
        %p261 = pneg %p168
        %p262 = pneg %p165
        %p263 = pneg %p194
        %p264 = pneg %p191
        %s265 = sand.u32 %s181, 1
        %s266 = scalar_lea.sflag [#allocation3], %s265
        %s267 = sand.u32 %s181, 1
        %s268 = scalar_lea.vmem [#allocation2], %s267
        %p269 = scmp.lt.s32.totalorder %s21, 1
        %s270 = scalar_select %p269, %s21, 1
        %s271 = smul.addr %s270, 8
        %s272 = scalar_lea.vmem %s0, %s271
        %v273 = vld [vmem:[%s1] sm:$0xff]
        %v274 = vld [vmem:[%s1 + $0x8] sm:$0xff]
        %v275 = vld [vmem:[%s1 + $0x10] sm:$0xff]
        %v276 = vld [vmem:[%s1 + $0x18] sm:$0xff]
        %v277 = vld [vmem:[%s1 + $0x20] sm:$0xff]
        %v278 = vld [vmem:[%s1 + $0x28] sm:$0xff]
        %v279 = vld [vmem:[%s1 + $0x30] sm:$0xff]
        %v280 = vld [vmem:[%s1 + $0x38] sm:$0xff]
        %v281 = vld [vmem:[%s272] sm:$0xff]
        %v282 = vld [vmem:[%s2] sm:$0xff]
        %v283 = vld [vmem:[%s2 + $0x8] sm:$0xff]
        %v284 = vld [vmem:[%s2 + $0x10] sm:$0xff]
        %v285 = vld [vmem:[%s2 + $0x18] sm:$0xff]
        %v286 = vld [vmem:[%s2 + $0x20] sm:$0xff]
        %v287 = vld [vmem:[%s2 + $0x28] sm:$0xff]
        %v288 = vld [vmem:[%s2 + $0x30] sm:$0xff]
        %v289 = vld [vmem:[%s2 + $0x38] sm:$0xff]
        %291 = vset.pattern.permute.xlu0 0
        %292 = vperm.xlu0 %291, %v282
        %v293 = vpop.permute.xlu0 %292
        %296 = vset.pattern.permute.xlu0 0
        %297 = vperm.xlu0 %296, %v283
        %v298 = vpop.permute.xlu0 %297
        %301 = vset.pattern.permute.xlu0 0
        %302 = vperm.xlu0 %301, %v284
        %v303 = vpop.permute.xlu0 %302
        %306 = vset.pattern.permute.xlu0 0
        %307 = vperm.xlu0 %306, %v285
        %v308 = vpop.permute.xlu0 %307
        %311 = vset.pattern.permute.xlu0 0
        %312 = vperm.xlu0 %311, %v286
        %v313 = vpop.permute.xlu0 %312
        %316 = vset.pattern.permute.xlu0 0
        %317 = vperm.xlu0 %316, %v287
        %v318 = vpop.permute.xlu0 %317
        %321 = vset.pattern.permute.xlu0 0
        %322 = vperm.xlu0 %321, %v288
        %v323 = vpop.permute.xlu0 %322
        %326 = vset.pattern.permute.xlu0 0
        %327 = vperm.xlu0 %326, %v289
        %v328 = vpop.permute.xlu0 %327
        %vm330 = vcmask 64512
        %v332 = vsel %vm330, %v273, 0
        %v335 = vsel %vm330, %v274, 0
        %v338 = vsel %vm330, %v275, 0
        %v341 = vsel %vm330, %v276, 0
        %v344 = vsel %vm330, %v277, 0
        %v347 = vsel %vm330, %v278, 0
        %v350 = vsel %vm330, %v279, 0
        %v353 = vsel %vm330, %v280, 0
        %355 = vmatprep.subr.mxu0 0.0
        %356 = vmatpush1.msra.mxu0 0.0
        %357 = vmatprep.subr.mxu0 0.0
        %358 = vmatpush1.msra.mxu0 0.0
        %359 = vmatprep.subr.mxu0 0.0
        %360 = vmatpush1.msra.mxu0 0.0
        %361 = vmatprep.subr.mxu0 0.0
        %362 = vmatpush1.msra.mxu0 0.0
        %363 = vmatprep.subr.mxu0 0.0
        %364 = vmatpush1.msra.mxu0 0.0
        %365 = vmatprep.subr.mxu0 0.0
        %366 = vmatpush1.msra.mxu0 0.0
        %367 = vmatprep.subr.mxu0 0.0
        %368 = vmatpush1.msra.mxu0 0.0
        %369 = vmatprep.subr.mxu0 0.0
        %370 = vmatpush1.msra.mxu0 0.0
        %371 = vmatprep.subr.mxu0 0.0
        %372 = vmatpush1.msra.mxu0 0.0
        %373 = vmatprep.subr.mxu0 0.0
        %374 = vmatpush1.msra.mxu0 0.0
        %375 = vmatprep.subr.mxu0 0.0
        %376 = vmatpush1.msra.mxu0 0.0
        %377 = vmatprep.subr.mxu0 0.0
        %378 = vmatpush1.msra.mxu0 0.0
        %379 = vmatprep.subr.mxu0 0.0
        %380 = vmatpush1.msra.mxu0 0.0
        %381 = vmatprep.subr.mxu0 0.0
        %382 = vmatpush1.msra.mxu0 0.0
        %383 = vmatprep.subr.mxu0 0.0
        %384 = vmatpush1.msra.mxu0 0.0
        %385 = vmatprep.subr.mxu0 0.0
        %386 = vmatpush1.msra.mxu0 %v281
        %387 = vmatprep.subr.mxu0 0.0
        %388 = vmatpush2.msra.mxu0 0.0
        %389 = vmatprep.subr.mxu0 0.0
        %390 = vmatpush2.msra.mxu0 0.0
        %391 = vmatprep.subr.mxu0 0.0
        %392 = vmatpush2.msra.mxu0 0.0
        %393 = vmatprep.subr.mxu0 0.0
        %394 = vmatpush2.msra.mxu0 0.0
        %395 = vmatprep.subr.mxu0 0.0
        %396 = vmatpush2.msra.mxu0 0.0
        %397 = vmatprep.subr.mxu0 0.0
        %398 = vmatpush2.msra.mxu0 0.0
        %399 = vmatprep.subr.mxu0 0.0
        %400 = vmatpush2.msra.mxu0 0.0
        %401 = vmatprep.subr.mxu0 0.0
        %402 = vmatpush2.msra.mxu0 0.0
        %403 = vmatprep.subr.mxu0 0.0
        %404 = vmatpush2.msra.mxu0 0.0
        %405 = vmatprep.subr.mxu0 0.0
        %406 = vmatpush2.msra.mxu0 0.0
        %407 = vmatprep.subr.mxu0 0.0
        %408 = vmatpush2.msra.mxu0 0.0
        %409 = vmatprep.subr.mxu0 0.0
        %410 = vmatpush2.msra.mxu0 0.0
        %411 = vmatprep.subr.mxu0 0.0
        %412 = vmatpush2.msra.mxu0 0.0
        %413 = vmatprep.subr.mxu0 0.0
        %414 = vmatpush2.msra.mxu0 0.0
        %415 = vmatprep.subr.mxu0 0.0
        %416 = vmatpush2.msra.mxu0 0.0
        %417 = vmatprep.subr.mxu0 0.0
        %418 = vmatpush2.msra.mxu0 0.0
        %419 = vmatprep.mubr.f32.mxu0 0.0
        %420 = vmatmul.mubr.f32.gmra.mxu0 %v332
        %v421 = vpop.f32.mrf.mxu0
        %v422 = vadd.f32 %v293, %v421
        %v423 = vpop.f32.mrf.mxu0
        %424 = vmatprep.mubr.f32.mxu0 0.0
        %425 = vmatmul.mubr.f32.gmra.mxu0 %v335
        %v426 = vpop.f32.mrf.mxu0
        %v427 = vadd.f32 %v298, %v426
        %v428 = vpop.f32.mrf.mxu0
        %429 = vmatprep.mubr.f32.mxu0 0.0
        %430 = vmatmul.mubr.f32.gmra.mxu0 %v338
        %v431 = vpop.f32.mrf.mxu0
        %v432 = vadd.f32 %v303, %v431
        %v433 = vpop.f32.mrf.mxu0
        %434 = vmatprep.mubr.f32.mxu0 0.0
        %435 = vmatmul.mubr.f32.gmra.mxu0 %v341
        %v436 = vpop.f32.mrf.mxu0
        %v437 = vadd.f32 %v308, %v436
        %v438 = vpop.f32.mrf.mxu0
        %439 = vmatprep.mubr.f32.mxu0 0.0
        %440 = vmatmul.mubr.f32.gmra.mxu0 %v344
        %v441 = vpop.f32.mrf.mxu0
        %v442 = vadd.f32 %v313, %v441
        %v443 = vpop.f32.mrf.mxu0
        %444 = vmatprep.mubr.f32.mxu0 0.0
        %445 = vmatmul.mubr.f32.gmra.mxu0 %v347
        %v446 = vpop.f32.mrf.mxu0
        %v447 = vadd.f32 %v318, %v446
        %v448 = vpop.f32.mrf.mxu0
        %449 = vmatprep.mubr.f32.mxu0 0.0
        %450 = vmatmul.mubr.f32.gmra.mxu0 %v350
        %v451 = vpop.f32.mrf.mxu0
        %v452 = vadd.f32 %v323, %v451
        %v453 = vpop.f32.mrf.mxu0
        %454 = vmatprep.mubr.f32.mxu0 0.0
        %455 = vmatmul.mubr.f32.gmra.mxu0 %v353
        %v456 = vpop.f32.mrf.mxu0
        %v457 = vadd.f32 %v328, %v456
        %v458 = vpop.f32.mrf.mxu0
        %459 = vdwg.mxu0
        %v460 = vtanh.pop %v422
        %v461 = vtanh.pop %v427
        %v462 = vtanh.pop %v432
        %v463 = vtanh.pop %v437
        %v464 = vtanh.pop %v442
        %v465 = vtanh.pop %v447
        %v466 = vtanh.pop %v452
        %v467 = vtanh.pop %v457
        %v468 = vld [vmem:[%s3] sm:$0xff]
        %v469 = vld [vmem:[%s3 + $0x8] sm:$0xff]
        %v470 = vld [vmem:[%s3 + $0x10] sm:$0xff]
        %v471 = vld [vmem:[%s3 + $0x18] sm:$0xff]
        %v472 = vld [vmem:[%s3 + $0x20] sm:$0xff]
        %v473 = vld [vmem:[%s3 + $0x28] sm:$0xff]
        %v474 = vld [vmem:[%s3 + $0x30] sm:$0xff]
        %v475 = vld [vmem:[%s3 + $0x38] sm:$0xff]
        %v476 = vld [vmem:[%s4] sm:$0xff]
        %v477 = vld [vmem:[%s4 + $0x8] sm:$0xff]
        %v478 = vld [vmem:[%s4 + $0x10] sm:$0xff]
        %v479 = vld [vmem:[%s4 + $0x18] sm:$0xff]
        %v480 = vld [vmem:[%s4 + $0x20] sm:$0xff]
        %v481 = vld [vmem:[%s4 + $0x28] sm:$0xff]
        %v482 = vld [vmem:[%s4 + $0x30] sm:$0xff]
        %v483 = vld [vmem:[%s4 + $0x38] sm:$0xff]
        %485 = vset.pattern.permute.xlu0 0
        %486 = vperm.xlu0 %485, %v476
        %v487 = vpop.permute.xlu0 %486
        %490 = vset.pattern.permute.xlu0 0
        %491 = vperm.xlu0 %490, %v477
        %v492 = vpop.permute.xlu0 %491
        %495 = vset.pattern.permute.xlu0 0
        %496 = vperm.xlu0 %495, %v478
        %v497 = vpop.permute.xlu0 %496
        %500 = vset.pattern.permute.xlu0 0
        %501 = vperm.xlu0 %500, %v479
        %v502 = vpop.permute.xlu0 %501
        %505 = vset.pattern.permute.xlu0 0
        %506 = vperm.xlu0 %505, %v480
        %v507 = vpop.permute.xlu0 %506
        %510 = vset.pattern.permute.xlu0 0
        %511 = vperm.xlu0 %510, %v481
        %v512 = vpop.permute.xlu0 %511
        %515 = vset.pattern.permute.xlu0 0
        %516 = vperm.xlu0 %515, %v482
        %v517 = vpop.permute.xlu0 %516
        %520 = vset.pattern.permute.xlu0 0
        %521 = vperm.xlu0 %520, %v483
        %v522 = vpop.permute.xlu0 %521
        %vm524 = vcmask 523264
        %v526 = vsel %vm524, %v468, 0
        %v529 = vsel %vm524, %v469, 0
        %v532 = vsel %vm524, %v470, 0
        %v535 = vsel %vm524, %v471, 0
        %v538 = vsel %vm524, %v472, 0
        %v541 = vsel %vm524, %v473, 0
        %v544 = vsel %vm524, %v474, 0
        %v547 = vsel %vm524, %v475, 0
        %549 = vmatprep.subr.mxu0 0.0
        %550 = vmatpush1.msra.mxu0 0.0
        %551 = vmatprep.subr.mxu0 0.0
        %552 = vmatpush1.msra.mxu0 0.0
        %553 = vmatprep.subr.mxu0 0.0
        %554 = vmatpush1.msra.mxu0 0.0
        %555 = vmatprep.subr.mxu0 0.0
        %556 = vmatpush1.msra.mxu0 0.0
        %557 = vmatprep.subr.mxu0 0.0
        %558 = vmatpush1.msra.mxu0 0.0
        %559 = vmatprep.subr.mxu0 0.0
        %560 = vmatpush1.msra.mxu0 0.0
        %561 = vmatprep.subr.mxu0 0.0
        %562 = vmatpush1.msra.mxu0 0.0
        %563 = vmatprep.subr.mxu0 0.0
        %564 = vmatpush1.msra.mxu0 0.0
        %565 = vmatprep.subr.mxu0 0.0
        %566 = vmatpush1.msra.mxu0 %v467
        %567 = vmatprep.subr.mxu0 0.0
        %568 = vmatpush1.msra.mxu0 %v466
        %569 = vmatprep.subr.mxu0 0.0
        %570 = vmatpush1.msra.mxu0 %v465
        %571 = vmatprep.subr.mxu0 0.0
        %572 = vmatpush1.msra.mxu0 %v464
        %573 = vmatprep.subr.mxu0 0.0
        %574 = vmatpush1.msra.mxu0 %v463
        %575 = vmatprep.subr.mxu0 0.0
        %576 = vmatpush1.msra.mxu0 %v462
        %577 = vmatprep.subr.mxu0 0.0
        %578 = vmatpush1.msra.mxu0 %v461
        %579 = vmatprep.subr.mxu0 0.0
        %580 = vmatpush1.msra.mxu0 %v460
        %581 = vmatprep.subr.mxu0 0.0
        %582 = vmatpush2.msra.mxu0 0.0
        %583 = vmatprep.subr.mxu0 0.0
        %584 = vmatpush2.msra.mxu0 0.0
        %585 = vmatprep.subr.mxu0 0.0
        %586 = vmatpush2.msra.mxu0 0.0
        %587 = vmatprep.subr.mxu0 0.0
        %588 = vmatpush2.msra.mxu0 0.0
        %589 = vmatprep.subr.mxu0 0.0
        %590 = vmatpush2.msra.mxu0 0.0
        %591 = vmatprep.subr.mxu0 0.0
        %592 = vmatpush2.msra.mxu0 0.0
        %593 = vmatprep.subr.mxu0 0.0
        %594 = vmatpush2.msra.mxu0 0.0
        %595 = vmatprep.subr.mxu0 0.0
        %596 = vmatpush2.msra.mxu0 0.0
        %597 = vmatprep.subr.mxu0 0.0
        %598 = vmatpush2.msra.mxu0 0.0
        %599 = vmatprep.subr.mxu0 0.0
        %600 = vmatpush2.msra.mxu0 0.0
        %601 = vmatprep.subr.mxu0 0.0
        %602 = vmatpush2.msra.mxu0 0.0
        %603 = vmatprep.subr.mxu0 0.0
        %604 = vmatpush2.msra.mxu0 0.0
        %605 = vmatprep.subr.mxu0 0.0
        %606 = vmatpush2.msra.mxu0 0.0
        %607 = vmatprep.subr.mxu0 0.0
        %608 = vmatpush2.msra.mxu0 0.0
        %609 = vmatprep.subr.mxu0 0.0
        %610 = vmatpush2.msra.mxu0 0.0
        %611 = vmatprep.subr.mxu0 0.0
        %612 = vmatpush2.msra.mxu0 0.0
        %613 = vmatprep.mubr.f32.mxu0 0.0
        %614 = vmatmul.mubr.f32.gmra.mxu0 %v526
        %v615 = vpop.f32.mrf.mxu0
        %v616 = vadd.f32 %v487, %v615
        %v617 = vpop.f32.mrf.mxu0
        %618 = vmatprep.mubr.f32.mxu0 0.0
        %619 = vmatmul.mubr.f32.gmra.mxu0 %v529
        %v620 = vpop.f32.mrf.mxu0
        %v621 = vadd.f32 %v492, %v620
        %v622 = vpop.f32.mrf.mxu0
        %623 = vmatprep.mubr.f32.mxu0 0.0
        %624 = vmatmul.mubr.f32.gmra.mxu0 %v532
        %v625 = vpop.f32.mrf.mxu0
        %v626 = vadd.f32 %v497, %v625
        %v627 = vpop.f32.mrf.mxu0
        %628 = vmatprep.mubr.f32.mxu0 0.0
        %629 = vmatmul.mubr.f32.gmra.mxu0 %v535
        %v630 = vpop.f32.mrf.mxu0
        %v631 = vadd.f32 %v502, %v630
        %v632 = vpop.f32.mrf.mxu0
        %633 = vmatprep.mubr.f32.mxu0 0.0
        %634 = vmatmul.mubr.f32.gmra.mxu0 %v538
        %v635 = vpop.f32.mrf.mxu0
        %v636 = vadd.f32 %v507, %v635
        %v637 = vpop.f32.mrf.mxu0
        %638 = vmatprep.mubr.f32.mxu0 0.0
        %639 = vmatmul.mubr.f32.gmra.mxu0 %v541
        %v640 = vpop.f32.mrf.mxu0
        %v641 = vadd.f32 %v512, %v640
        %v642 = vpop.f32.mrf.mxu0
        %643 = vmatprep.mubr.f32.mxu0 0.0
        %644 = vmatmul.mubr.f32.gmra.mxu0 %v544
        %v645 = vpop.f32.mrf.mxu0
        %v646 = vadd.f32 %v517, %v645
        %v647 = vpop.f32.mrf.mxu0
        %648 = vmatprep.mubr.f32.mxu0 0.0
        %649 = vmatmul.mubr.f32.gmra.mxu0 %v547
        %v650 = vpop.f32.mrf.mxu0
        %v651 = vadd.f32 %v522, %v650
        %v652 = vpop.f32.mrf.mxu0
        %653 = vdwg.mxu0
        %v654 = vtanh.pop %v616
        %v655 = vtanh.pop %v621
        %v656 = vtanh.pop %v626
        %v657 = vtanh.pop %v631
        %v658 = vtanh.pop %v636
        %v659 = vtanh.pop %v641
        %v660 = vtanh.pop %v646
        %v661 = vtanh.pop %v651
        %s662 = scalar_lea.vmem %s3, 64
        %v663 = vld [vmem:[%s662] sm:$0xff]
        %v664 = vld [vmem:[%s662 + $0x8] sm:$0xff]
        %v665 = vld [vmem:[%s662 + $0x10] sm:$0xff]
        %v666 = vld [vmem:[%s662 + $0x18] sm:$0xff]
        %v667 = vld [vmem:[%s662 + $0x20] sm:$0xff]
        %v668 = vld [vmem:[%s662 + $0x28] sm:$0xff]
        %v669 = vld [vmem:[%s662 + $0x30] sm:$0xff]
        %v670 = vld [vmem:[%s662 + $0x38] sm:$0xff]
        %s671 = scalar_lea.vmem %s4, 64
        %v672 = vld [vmem:[%s671] sm:$0xff]
        %v673 = vld [vmem:[%s671 + $0x8] sm:$0xff]
        %v674 = vld [vmem:[%s671 + $0x10] sm:$0xff]
        %v675 = vld [vmem:[%s671 + $0x18] sm:$0xff]
        %v676 = vld [vmem:[%s671 + $0x20] sm:$0xff]
        %v677 = vld [vmem:[%s671 + $0x28] sm:$0xff]
        %v678 = vld [vmem:[%s671 + $0x30] sm:$0xff]
        %v679 = vld [vmem:[%s671 + $0x38] sm:$0xff]
        %681 = vset.pattern.permute.xlu0 0
        %682 = vperm.xlu0 %681, %v672
        %v683 = vpop.permute.xlu0 %682
        %686 = vset.pattern.permute.xlu0 0
        %687 = vperm.xlu0 %686, %v673
        %v688 = vpop.permute.xlu0 %687
        %691 = vset.pattern.permute.xlu0 0
        %692 = vperm.xlu0 %691, %v674
        %v693 = vpop.permute.xlu0 %692
        %696 = vset.pattern.permute.xlu0 0
        %697 = vperm.xlu0 %696, %v675
        %v698 = vpop.permute.xlu0 %697
        %701 = vset.pattern.permute.xlu0 0
        %702 = vperm.xlu0 %701, %v676
        %v703 = vpop.permute.xlu0 %702
        %706 = vset.pattern.permute.xlu0 0
        %707 = vperm.xlu0 %706, %v677
        %v708 = vpop.permute.xlu0 %707
        %711 = vset.pattern.permute.xlu0 0
        %712 = vperm.xlu0 %711, %v678
        %v713 = vpop.permute.xlu0 %712
        %716 = vset.pattern.permute.xlu0 0
        %717 = vperm.xlu0 %716, %v679
        %v718 = vpop.permute.xlu0 %717
        %v721 = vsel %vm524, %v663, 0
        %v724 = vsel %vm524, %v664, 0
        %v727 = vsel %vm524, %v665, 0
        %v730 = vsel %vm524, %v666, 0
        %v733 = vsel %vm524, %v667, 0
        %v736 = vsel %vm524, %v668, 0
        %v739 = vsel %vm524, %v669, 0
        %v742 = vsel %vm524, %v670, 0
        %744 = vmatprep.subr.mxu0 0.0
        %745 = vmatpush1.msra.mxu0 0.0
        %746 = vmatprep.subr.mxu0 0.0
        %747 = vmatpush1.msra.mxu0 0.0
        %748 = vmatprep.subr.mxu0 0.0
        %749 = vmatpush1.msra.mxu0 0.0
        %750 = vmatprep.subr.mxu0 0.0
        %751 = vmatpush1.msra.mxu0 0.0
        %752 = vmatprep.subr.mxu0 0.0
        %753 = vmatpush1.msra.mxu0 0.0
        %754 = vmatprep.subr.mxu0 0.0
        %755 = vmatpush1.msra.mxu0 0.0
        %756 = vmatprep.subr.mxu0 0.0
        %757 = vmatpush1.msra.mxu0 0.0
        %758 = vmatprep.subr.mxu0 0.0
        %759 = vmatpush1.msra.mxu0 0.0
        %760 = vmatprep.subr.mxu0 0.0
        %761 = vmatpush1.msra.mxu0 %v661
        %762 = vmatprep.subr.mxu0 0.0
        %763 = vmatpush1.msra.mxu0 %v660
        %764 = vmatprep.subr.mxu0 0.0
        %765 = vmatpush1.msra.mxu0 %v659
        %766 = vmatprep.subr.mxu0 0.0
        %767 = vmatpush1.msra.mxu0 %v658
        %768 = vmatprep.subr.mxu0 0.0
        %769 = vmatpush1.msra.mxu0 %v657
        %770 = vmatprep.subr.mxu0 0.0
        %771 = vmatpush1.msra.mxu0 %v656
        %772 = vmatprep.subr.mxu0 0.0
        %773 = vmatpush1.msra.mxu0 %v655
        %774 = vmatprep.subr.mxu0 0.0
        %775 = vmatpush1.msra.mxu0 %v654
        %776 = vmatprep.subr.mxu0 0.0
        %777 = vmatpush2.msra.mxu0 0.0
        %778 = vmatprep.subr.mxu0 0.0
        %779 = vmatpush2.msra.mxu0 0.0
        %780 = vmatprep.subr.mxu0 0.0
        %781 = vmatpush2.msra.mxu0 0.0
        %782 = vmatprep.subr.mxu0 0.0
        %783 = vmatpush2.msra.mxu0 0.0
        %784 = vmatprep.subr.mxu0 0.0
        %785 = vmatpush2.msra.mxu0 0.0
        %786 = vmatprep.subr.mxu0 0.0
        %787 = vmatpush2.msra.mxu0 0.0
        %788 = vmatprep.subr.mxu0 0.0
        %789 = vmatpush2.msra.mxu0 0.0
        %790 = vmatprep.subr.mxu0 0.0
        %791 = vmatpush2.msra.mxu0 0.0
        %792 = vmatprep.subr.mxu0 0.0
        %793 = vmatpush2.msra.mxu0 0.0
        %794 = vmatprep.subr.mxu0 0.0
        %795 = vmatpush2.msra.mxu0 0.0
        %796 = vmatprep.subr.mxu0 0.0
        %797 = vmatpush2.msra.mxu0 0.0
        %798 = vmatprep.subr.mxu0 0.0
        %799 = vmatpush2.msra.mxu0 0.0
        %800 = vmatprep.subr.mxu0 0.0
        %801 = vmatpush2.msra.mxu0 0.0
        %802 = vmatprep.subr.mxu0 0.0
        %803 = vmatpush2.msra.mxu0 0.0
        %804 = vmatprep.subr.mxu0 0.0
        %805 = vmatpush2.msra.mxu0 0.0
        %806 = vmatprep.subr.mxu0 0.0
        %807 = vmatpush2.msra.mxu0 0.0
        %808 = vmatprep.mubr.f32.mxu0 0.0
        %809 = vmatmul.mubr.f32.gmra.mxu0 %v721
        %v810 = vpop.f32.mrf.mxu0
        %v811 = vadd.f32 %v683, %v810
        %v812 = vpop.f32.mrf.mxu0
        %813 = vmatprep.mubr.f32.mxu0 0.0
        %814 = vmatmul.mubr.f32.gmra.mxu0 %v724
        %v815 = vpop.f32.mrf.mxu0
        %v816 = vadd.f32 %v688, %v815
        %v817 = vpop.f32.mrf.mxu0
        %818 = vmatprep.mubr.f32.mxu0 0.0
        %819 = vmatmul.mubr.f32.gmra.mxu0 %v727
        %v820 = vpop.f32.mrf.mxu0
        %v821 = vadd.f32 %v693, %v820
        %v822 = vpop.f32.mrf.mxu0
        %823 = vmatprep.mubr.f32.mxu0 0.0
        %824 = vmatmul.mubr.f32.gmra.mxu0 %v730
        %v825 = vpop.f32.mrf.mxu0
        %v826 = vadd.f32 %v698, %v825
        %v827 = vpop.f32.mrf.mxu0
        %828 = vmatprep.mubr.f32.mxu0 0.0
        %829 = vmatmul.mubr.f32.gmra.mxu0 %v733
        %v830 = vpop.f32.mrf.mxu0
        %v831 = vadd.f32 %v703, %v830
        %v832 = vpop.f32.mrf.mxu0
        %833 = vmatprep.mubr.f32.mxu0 0.0
        %834 = vmatmul.mubr.f32.gmra.mxu0 %v736
        %v835 = vpop.f32.mrf.mxu0
        %v836 = vadd.f32 %v708, %v835
        %v837 = vpop.f32.mrf.mxu0
        %838 = vmatprep.mubr.f32.mxu0 0.0
        %839 = vmatmul.mubr.f32.gmra.mxu0 %v739
        %v840 = vpop.f32.mrf.mxu0
        %v841 = vadd.f32 %v713, %v840
        %v842 = vpop.f32.mrf.mxu0
        %843 = vmatprep.mubr.f32.mxu0 0.0
        %844 = vmatmul.mubr.f32.gmra.mxu0 %v742
        %v845 = vpop.f32.mrf.mxu0
        %v846 = vadd.f32 %v718, %v845
        %v847 = vpop.f32.mrf.mxu0
        %848 = vdwg.mxu0
        %v849 = vtanh.pop %v811
        %v850 = vtanh.pop %v816
        %v851 = vtanh.pop %v821
        %v852 = vtanh.pop %v826
        %v853 = vtanh.pop %v831
        %v854 = vtanh.pop %v836
        %v855 = vtanh.pop %v841
        %v856 = vtanh.pop %v846
        %s857 = scalar_lea.vmem %s3, 128
        %v858 = vld [vmem:[%s857] sm:$0xff]
        %v859 = vld [vmem:[%s857 + $0x8] sm:$0xff]
        %v860 = vld [vmem:[%s857 + $0x10] sm:$0xff]
        %v861 = vld [vmem:[%s857 + $0x18] sm:$0xff]
        %v862 = vld [vmem:[%s857 + $0x20] sm:$0xff]
        %v863 = vld [vmem:[%s857 + $0x28] sm:$0xff]
        %v864 = vld [vmem:[%s857 + $0x30] sm:$0xff]
        %v865 = vld [vmem:[%s857 + $0x38] sm:$0xff]
        %s866 = scalar_lea.vmem %s4, 128
        %v867 = vld [vmem:[%s866] sm:$0xff]
        %v868 = vld [vmem:[%s866 + $0x8] sm:$0xff]
        %v869 = vld [vmem:[%s866 + $0x10] sm:$0xff]
        %v870 = vld [vmem:[%s866 + $0x18] sm:$0xff]
        %v871 = vld [vmem:[%s866 + $0x20] sm:$0xff]
        %v872 = vld [vmem:[%s866 + $0x28] sm:$0xff]
        %v873 = vld [vmem:[%s866 + $0x30] sm:$0xff]
        %v874 = vld [vmem:[%s866 + $0x38] sm:$0xff]
        %876 = vset.pattern.permute.xlu0 0
        %877 = vperm.xlu0 %876, %v867
        %v878 = vpop.permute.xlu0 %877
        %881 = vset.pattern.permute.xlu0 0
        %882 = vperm.xlu0 %881, %v868
        %v883 = vpop.permute.xlu0 %882
        %886 = vset.pattern.permute.xlu0 0
        %887 = vperm.xlu0 %886, %v869
        %v888 = vpop.permute.xlu0 %887
        %891 = vset.pattern.permute.xlu0 0
        %892 = vperm.xlu0 %891, %v870
        %v893 = vpop.permute.xlu0 %892
        %896 = vset.pattern.permute.xlu0 0
        %897 = vperm.xlu0 %896, %v871
        %v898 = vpop.permute.xlu0 %897
        %901 = vset.pattern.permute.xlu0 0
        %902 = vperm.xlu0 %901, %v872
        %v903 = vpop.permute.xlu0 %902
        %906 = vset.pattern.permute.xlu0 0
        %907 = vperm.xlu0 %906, %v873
        %v908 = vpop.permute.xlu0 %907
        %911 = vset.pattern.permute.xlu0 0
        %912 = vperm.xlu0 %911, %v874
        %v913 = vpop.permute.xlu0 %912
        %v916 = vsel %vm524, %v858, 0
        %v919 = vsel %vm524, %v859, 0
        %v922 = vsel %vm524, %v860, 0
        %v925 = vsel %vm524, %v861, 0
        %v928 = vsel %vm524, %v862, 0
        %v931 = vsel %vm524, %v863, 0
        %v934 = vsel %vm524, %v864, 0
        %v937 = vsel %vm524, %v865, 0
        %939 = vmatprep.subr.mxu0 0.0
        %940 = vmatpush1.msra.mxu0 0.0
        %941 = vmatprep.subr.mxu0 0.0
        %942 = vmatpush1.msra.mxu0 0.0
        %943 = vmatprep.subr.mxu0 0.0
        %944 = vmatpush1.msra.mxu0 0.0
        %945 = vmatprep.subr.mxu0 0.0
        %946 = vmatpush1.msra.mxu0 0.0
        %947 = vmatprep.subr.mxu0 0.0
        %948 = vmatpush1.msra.mxu0 0.0
        %949 = vmatprep.subr.mxu0 0.0
        %950 = vmatpush1.msra.mxu0 0.0
        %951 = vmatprep.subr.mxu0 0.0
        %952 = vmatpush1.msra.mxu0 0.0
        %953 = vmatprep.subr.mxu0 0.0
        %954 = vmatpush1.msra.mxu0 0.0
        %955 = vmatprep.subr.mxu0 0.0
        %956 = vmatpush1.msra.mxu0 %v856
        %957 = vmatprep.subr.mxu0 0.0
        %958 = vmatpush1.msra.mxu0 %v855
        %959 = vmatprep.subr.mxu0 0.0
        %960 = vmatpush1.msra.mxu0 %v854
        %961 = vmatprep.subr.mxu0 0.0
        %962 = vmatpush1.msra.mxu0 %v853
        %963 = vmatprep.subr.mxu0 0.0
        %964 = vmatpush1.msra.mxu0 %v852
        %965 = vmatprep.subr.mxu0 0.0
        %966 = vmatpush1.msra.mxu0 %v851
        %967 = vmatprep.subr.mxu0 0.0
        %968 = vmatpush1.msra.mxu0 %v850
        %969 = vmatprep.subr.mxu0 0.0
        %970 = vmatpush1.msra.mxu0 %v849
        %971 = vmatprep.subr.mxu0 0.0
        %972 = vmatpush2.msra.mxu0 0.0
        %973 = vmatprep.subr.mxu0 0.0
        %974 = vmatpush2.msra.mxu0 0.0
        %975 = vmatprep.subr.mxu0 0.0
        %976 = vmatpush2.msra.mxu0 0.0
        %977 = vmatprep.subr.mxu0 0.0
        %978 = vmatpush2.msra.mxu0 0.0
        %979 = vmatprep.subr.mxu0 0.0
        %980 = vmatpush2.msra.mxu0 0.0
        %981 = vmatprep.subr.mxu0 0.0
        %982 = vmatpush2.msra.mxu0 0.0
        %983 = vmatprep.subr.mxu0 0.0
        %984 = vmatpush2.msra.mxu0 0.0
        %985 = vmatprep.subr.mxu0 0.0
        %986 = vmatpush2.msra.mxu0 0.0
        %987 = vmatprep.subr.mxu0 0.0
        %988 = vmatpush2.msra.mxu0 0.0
        %989 = vmatprep.subr.mxu0 0.0
        %990 = vmatpush2.msra.mxu0 0.0
        %991 = vmatprep.subr.mxu0 0.0
        %992 = vmatpush2.msra.mxu0 0.0
        %993 = vmatprep.subr.mxu0 0.0
        %994 = vmatpush2.msra.mxu0 0.0
        %995 = vmatprep.subr.mxu0 0.0
        %996 = vmatpush2.msra.mxu0 0.0
        %997 = vmatprep.subr.mxu0 0.0
        %998 = vmatpush2.msra.mxu0 0.0
        %999 = vmatprep.subr.mxu0 0.0
        %1000 = vmatpush2.msra.mxu0 0.0
        %1001 = vmatprep.subr.mxu0 0.0
        %1002 = vmatpush2.msra.mxu0 0.0
        %1003 = vmatprep.mubr.f32.mxu0 0.0
        %1004 = vmatmul.mubr.f32.gmra.mxu0 %v916
        %v1005 = vpop.f32.mrf.mxu0
        %v1006 = vadd.f32 %v878, %v1005
        %v1007 = vpop.f32.mrf.mxu0
        %1008 = vmatprep.mubr.f32.mxu0 0.0
        %1009 = vmatmul.mubr.f32.gmra.mxu0 %v919
        %v1010 = vpop.f32.mrf.mxu0
        %v1011 = vadd.f32 %v883, %v1010
        %v1012 = vpop.f32.mrf.mxu0
        %1013 = vmatprep.mubr.f32.mxu0 0.0
        %1014 = vmatmul.mubr.f32.gmra.mxu0 %v922
        %v1015 = vpop.f32.mrf.mxu0
        %v1016 = vadd.f32 %v888, %v1015
        %v1017 = vpop.f32.mrf.mxu0
        %1018 = vmatprep.mubr.f32.mxu0 0.0
        %1019 = vmatmul.mubr.f32.gmra.mxu0 %v925
        %v1020 = vpop.f32.mrf.mxu0
        %v1021 = vadd.f32 %v893, %v1020
        %v1022 = vpop.f32.mrf.mxu0
        %1023 = vmatprep.mubr.f32.mxu0 0.0
        %1024 = vmatmul.mubr.f32.gmra.mxu0 %v928
        %v1025 = vpop.f32.mrf.mxu0
        %v1026 = vadd.f32 %v898, %v1025
        %v1027 = vpop.f32.mrf.mxu0
        %1028 = vmatprep.mubr.f32.mxu0 0.0
        %1029 = vmatmul.mubr.f32.gmra.mxu0 %v931
        %v1030 = vpop.f32.mrf.mxu0
        %v1031 = vadd.f32 %v903, %v1030
        %v1032 = vpop.f32.mrf.mxu0
        %1033 = vmatprep.mubr.f32.mxu0 0.0
        %1034 = vmatmul.mubr.f32.gmra.mxu0 %v934
        %v1035 = vpop.f32.mrf.mxu0
        %v1036 = vadd.f32 %v908, %v1035
        %v1037 = vpop.f32.mrf.mxu0
        %1038 = vmatprep.mubr.f32.mxu0 0.0
        %1039 = vmatmul.mubr.f32.gmra.mxu0 %v937
        %v1040 = vpop.f32.mrf.mxu0
        %v1041 = vadd.f32 %v913, %v1040
        %v1042 = vpop.f32.mrf.mxu0
        %1043 = vdwg.mxu0
        %v1044 = vtanh.pop %v1006
        %v1045 = vtanh.pop %v1011
        %v1046 = vtanh.pop %v1016
        %v1047 = vtanh.pop %v1021
        %v1048 = vtanh.pop %v1026
        %v1049 = vtanh.pop %v1031
        %v1050 = vtanh.pop %v1036
        %v1051 = vtanh.pop %v1041
        %s1052 = scalar_lea.vmem %s3, 192
        %v1053 = vld [vmem:[%s1052] sm:$0xff]
        %v1054 = vld [vmem:[%s1052 + $0x8] sm:$0xff]
        %v1055 = vld [vmem:[%s1052 + $0x10] sm:$0xff]
        %v1056 = vld [vmem:[%s1052 + $0x18] sm:$0xff]
        %v1057 = vld [vmem:[%s1052 + $0x20] sm:$0xff]
        %v1058 = vld [vmem:[%s1052 + $0x28] sm:$0xff]
        %v1059 = vld [vmem:[%s1052 + $0x30] sm:$0xff]
        %v1060 = vld [vmem:[%s1052 + $0x38] sm:$0xff]
        %s1061 = scalar_lea.vmem %s4, 192
        %v1062 = vld [vmem:[%s1061] sm:$0xff]
        %v1063 = vld [vmem:[%s1061 + $0x8] sm:$0xff]
        %v1064 = vld [vmem:[%s1061 + $0x10] sm:$0xff]
        %v1065 = vld [vmem:[%s1061 + $0x18] sm:$0xff]
        %v1066 = vld [vmem:[%s1061 + $0x20] sm:$0xff]
        %v1067 = vld [vmem:[%s1061 + $0x28] sm:$0xff]
        %v1068 = vld [vmem:[%s1061 + $0x30] sm:$0xff]
        %v1069 = vld [vmem:[%s1061 + $0x38] sm:$0xff]
        %1071 = vset.pattern.permute.xlu0 0
        %1072 = vperm.xlu0 %1071, %v1062
        %v1073 = vpop.permute.xlu0 %1072
        %1076 = vset.pattern.permute.xlu0 0
        %1077 = vperm.xlu0 %1076, %v1063
        %v1078 = vpop.permute.xlu0 %1077
        %1081 = vset.pattern.permute.xlu0 0
        %1082 = vperm.xlu0 %1081, %v1064
        %v1083 = vpop.permute.xlu0 %1082
        %1086 = vset.pattern.permute.xlu0 0
        %1087 = vperm.xlu0 %1086, %v1065
        %v1088 = vpop.permute.xlu0 %1087
        %1091 = vset.pattern.permute.xlu0 0
        %1092 = vperm.xlu0 %1091, %v1066
        %v1093 = vpop.permute.xlu0 %1092
        %1096 = vset.pattern.permute.xlu0 0
        %1097 = vperm.xlu0 %1096, %v1067
        %v1098 = vpop.permute.xlu0 %1097
        %1101 = vset.pattern.permute.xlu0 0
        %1102 = vperm.xlu0 %1101, %v1068
        %v1103 = vpop.permute.xlu0 %1102
        %1106 = vset.pattern.permute.xlu0 0
        %1107 = vperm.xlu0 %1106, %v1069
        %v1108 = vpop.permute.xlu0 %1107
        %v1111 = vsel %vm524, %v1053, 0
        %v1114 = vsel %vm524, %v1054, 0
        %v1117 = vsel %vm524, %v1055, 0
        %v1120 = vsel %vm524, %v1056, 0
        %v1123 = vsel %vm524, %v1057, 0
        %v1126 = vsel %vm524, %v1058, 0
        %v1129 = vsel %vm524, %v1059, 0
        %v1132 = vsel %vm524, %v1060, 0
        %1134 = vmatprep.subr.mxu0 0.0
        %1135 = vmatpush1.msra.mxu0 0.0
        %1136 = vmatprep.subr.mxu0 0.0
        %1137 = vmatpush1.msra.mxu0 0.0
        %1138 = vmatprep.subr.mxu0 0.0
        %1139 = vmatpush1.msra.mxu0 0.0
        %1140 = vmatprep.subr.mxu0 0.0
        %1141 = vmatpush1.msra.mxu0 0.0
        %1142 = vmatprep.subr.mxu0 0.0
        %1143 = vmatpush1.msra.mxu0 0.0
        %1144 = vmatprep.subr.mxu0 0.0
        %1145 = vmatpush1.msra.mxu0 0.0
        %1146 = vmatprep.subr.mxu0 0.0
        %1147 = vmatpush1.msra.mxu0 0.0
        %1148 = vmatprep.subr.mxu0 0.0
        %1149 = vmatpush1.msra.mxu0 0.0
        %1150 = vmatprep.subr.mxu0 0.0
        %1151 = vmatpush1.msra.mxu0 %v1051
        %1152 = vmatprep.subr.mxu0 0.0
        %1153 = vmatpush1.msra.mxu0 %v1050
        %1154 = vmatprep.subr.mxu0 0.0
        %1155 = vmatpush1.msra.mxu0 %v1049
        %1156 = vmatprep.subr.mxu0 0.0
        %1157 = vmatpush1.msra.mxu0 %v1048
        %1158 = vmatprep.subr.mxu0 0.0
        %1159 = vmatpush1.msra.mxu0 %v1047
        %1160 = vmatprep.subr.mxu0 0.0
        %1161 = vmatpush1.msra.mxu0 %v1046
        %1162 = vmatprep.subr.mxu0 0.0
        %1163 = vmatpush1.msra.mxu0 %v1045
        %1164 = vmatprep.subr.mxu0 0.0
        %1165 = vmatpush1.msra.mxu0 %v1044
        %1166 = vmatprep.subr.mxu0 0.0
        %1167 = vmatpush2.msra.mxu0 0.0
        %1168 = vmatprep.subr.mxu0 0.0
        %1169 = vmatpush2.msra.mxu0 0.0
        %1170 = vmatprep.subr.mxu0 0.0
        %1171 = vmatpush2.msra.mxu0 0.0
        %1172 = vmatprep.subr.mxu0 0.0
        %1173 = vmatpush2.msra.mxu0 0.0
        %1174 = vmatprep.subr.mxu0 0.0
        %1175 = vmatpush2.msra.mxu0 0.0
        %1176 = vmatprep.subr.mxu0 0.0
        %1177 = vmatpush2.msra.mxu0 0.0
        %1178 = vmatprep.subr.mxu0 0.0
        %1179 = vmatpush2.msra.mxu0 0.0
        %1180 = vmatprep.subr.mxu0 0.0
        %1181 = vmatpush2.msra.mxu0 0.0
        %1182 = vmatprep.subr.mxu0 0.0
        %1183 = vmatpush2.msra.mxu0 0.0
        %1184 = vmatprep.subr.mxu0 0.0
        %1185 = vmatpush2.msra.mxu0 0.0
        %1186 = vmatprep.subr.mxu0 0.0
        %1187 = vmatpush2.msra.mxu0 0.0
        %1188 = vmatprep.subr.mxu0 0.0
        %1189 = vmatpush2.msra.mxu0 0.0
        %1190 = vmatprep.subr.mxu0 0.0
        %1191 = vmatpush2.msra.mxu0 0.0
        %1192 = vmatprep.subr.mxu0 0.0
        %1193 = vmatpush2.msra.mxu0 0.0
        %1194 = vmatprep.subr.mxu0 0.0
        %1195 = vmatpush2.msra.mxu0 0.0
        %1196 = vmatprep.subr.mxu0 0.0
        %1197 = vmatpush2.msra.mxu0 0.0
        %1198 = vmatprep.mubr.f32.mxu0 0.0
        %1199 = vmatmul.mubr.f32.gmra.mxu0 %v1111
        %v1200 = vpop.f32.mrf.mxu0
        %v1201 = vadd.f32 %v1073, %v1200
        %v1202 = vpop.f32.mrf.mxu0
        %1203 = vmatprep.mubr.f32.mxu0 0.0
        %1204 = vmatmul.mubr.f32.gmra.mxu0 %v1114
        %v1205 = vpop.f32.mrf.mxu0
        %v1206 = vadd.f32 %v1078, %v1205
        %v1207 = vpop.f32.mrf.mxu0
        %1208 = vmatprep.mubr.f32.mxu0 0.0
        %1209 = vmatmul.mubr.f32.gmra.mxu0 %v1117
        %v1210 = vpop.f32.mrf.mxu0
        %v1211 = vadd.f32 %v1083, %v1210
        %v1212 = vpop.f32.mrf.mxu0
        %1213 = vmatprep.mubr.f32.mxu0 0.0
        %1214 = vmatmul.mubr.f32.gmra.mxu0 %v1120
        %v1215 = vpop.f32.mrf.mxu0
        %v1216 = vadd.f32 %v1088, %v1215
        %v1217 = vpop.f32.mrf.mxu0
        %1218 = vmatprep.mubr.f32.mxu0 0.0
        %1219 = vmatmul.mubr.f32.gmra.mxu0 %v1123
        %v1220 = vpop.f32.mrf.mxu0
        %v1221 = vadd.f32 %v1093, %v1220
        %v1222 = vpop.f32.mrf.mxu0
        %1223 = vmatprep.mubr.f32.mxu0 0.0
        %1224 = vmatmul.mubr.f32.gmra.mxu0 %v1126
        %v1225 = vpop.f32.mrf.mxu0
        %v1226 = vadd.f32 %v1098, %v1225
        %v1227 = vpop.f32.mrf.mxu0
        %1228 = vmatprep.mubr.f32.mxu0 0.0
        %1229 = vmatmul.mubr.f32.gmra.mxu0 %v1129
        %v1230 = vpop.f32.mrf.mxu0
        %v1231 = vadd.f32 %v1103, %v1230
        %v1232 = vpop.f32.mrf.mxu0
        %1233 = vmatprep.mubr.f32.mxu0 0.0
        %1234 = vmatmul.mubr.f32.gmra.mxu0 %v1132
        %v1235 = vpop.f32.mrf.mxu0
        %v1236 = vadd.f32 %v1108, %v1235
        %v1237 = vpop.f32.mrf.mxu0
        %1238 = vdwg.mxu0
        %v1239 = vtanh.pop %v1201
        %v1240 = vtanh.pop %v1206
        %v1241 = vtanh.pop %v1211
        %v1242 = vtanh.pop %v1216
        %v1243 = vtanh.pop %v1221
        %v1244 = vtanh.pop %v1226
        %v1245 = vtanh.pop %v1231
        %v1246 = vtanh.pop %v1236
        %v1247 = vld [vmem:[%s5] sm:$0xff]
        %v1248 = vld [vmem:[%s6] sm:$0xff]
        %1250 = vset.pattern.permute.xlu0 0
        %1251 = vperm.xlu0 %1250, %v1248
        %v1252 = vpop.permute.xlu0 %1251
        %v1255 = vsel %vm524, %v1247, 0
        %1257 = vmatprep.subr.mxu0 0.0
        %1258 = vmatpush1.msra.mxu0 0.0
        %1259 = vmatprep.subr.mxu0 0.0
        %1260 = vmatpush1.msra.mxu0 0.0
        %1261 = vmatprep.subr.mxu0 0.0
        %1262 = vmatpush1.msra.mxu0 0.0
        %1263 = vmatprep.subr.mxu0 0.0
        %1264 = vmatpush1.msra.mxu0 0.0
        %1265 = vmatprep.subr.mxu0 0.0
        %1266 = vmatpush1.msra.mxu0 0.0
        %1267 = vmatprep.subr.mxu0 0.0
        %1268 = vmatpush1.msra.mxu0 0.0
        %1269 = vmatprep.subr.mxu0 0.0
        %1270 = vmatpush1.msra.mxu0 0.0
        %1271 = vmatprep.subr.mxu0 0.0
        %1272 = vmatpush1.msra.mxu0 0.0
        %1273 = vmatprep.subr.mxu0 0.0
        %1274 = vmatpush1.msra.mxu0 %v1246
        %1275 = vmatprep.subr.mxu0 0.0
        %1276 = vmatpush1.msra.mxu0 %v1245
        %1277 = vmatprep.subr.mxu0 0.0
        %1278 = vmatpush1.msra.mxu0 %v1244
        %1279 = vmatprep.subr.mxu0 0.0
        %1280 = vmatpush1.msra.mxu0 %v1243
        %1281 = vmatprep.subr.mxu0 0.0
        %1282 = vmatpush1.msra.mxu0 %v1242
        %1283 = vmatprep.subr.mxu0 0.0
        %1284 = vmatpush1.msra.mxu0 %v1241
        %1285 = vmatprep.subr.mxu0 0.0
        %1286 = vmatpush1.msra.mxu0 %v1240
        %1287 = vmatprep.subr.mxu0 0.0
        %1288 = vmatpush1.msra.mxu0 %v1239
        %1289 = vmatprep.subr.mxu0 0.0
        %1290 = vmatpush2.msra.mxu0 0.0
        %1291 = vmatprep.subr.mxu0 0.0
        %1292 = vmatpush2.msra.mxu0 0.0
        %1293 = vmatprep.subr.mxu0 0.0
        %1294 = vmatpush2.msra.mxu0 0.0
        %1295 = vmatprep.subr.mxu0 0.0
        %1296 = vmatpush2.msra.mxu0 0.0
        %1297 = vmatprep.subr.mxu0 0.0
        %1298 = vmatpush2.msra.mxu0 0.0
        %1299 = vmatprep.subr.mxu0 0.0
        %1300 = vmatpush2.msra.mxu0 0.0
        %1301 = vmatprep.subr.mxu0 0.0
        %1302 = vmatpush2.msra.mxu0 0.0
        %1303 = vmatprep.subr.mxu0 0.0
        %1304 = vmatpush2.msra.mxu0 0.0
        %1305 = vmatprep.subr.mxu0 0.0
        %1306 = vmatpush2.msra.mxu0 0.0
        %1307 = vmatprep.subr.mxu0 0.0
        %1308 = vmatpush2.msra.mxu0 0.0
        %1309 = vmatprep.subr.mxu0 0.0
        %1310 = vmatpush2.msra.mxu0 0.0
        %1311 = vmatprep.subr.mxu0 0.0
        %1312 = vmatpush2.msra.mxu0 0.0
        %1313 = vmatprep.subr.mxu0 0.0
        %1314 = vmatpush2.msra.mxu0 0.0
        %1315 = vmatprep.subr.mxu0 0.0
        %1316 = vmatpush2.msra.mxu0 0.0
        %1317 = vmatprep.subr.mxu0 0.0
        %1318 = vmatpush2.msra.mxu0 0.0
        %1319 = vmatprep.subr.mxu0 0.0
        %1320 = vmatpush2.msra.mxu0 0.0
        %1321 = vmatprep.mubr.f32.mxu0 0.0
        %1322 = vmatmul.mubr.f32.gmra.mxu0 %v1255
        %v1323 = vpop.f32.mrf.mxu0
        %v1324 = vadd.f32 %v1252, %v1323
        %v1325 = vpop.f32.mrf.mxu0
        %1326 = vdwg.mxu0
        %1327 = vst [vmem:[%s268] sm:$0x1] %v1324
        %s1328 = sand.u32 %s181, 1
        %s1329 = scalar_lea.sflag [#allocation3], %s1328
        %s1330 = sand.u32 %s181, 1
        %s1331 = scalar_lea.vmem [#allocation2], %s1330
        // Predicated region
        $region49: #{tpu_custom_call.1} parent=47 // pred_check
          %p1332 = pneg %p191
        $region50: #{tpu_custom_call.1} parent=47 // pred_check_branch
          %1334 = sbr.rel (%p1332) target = $region52
        $region51: #{tpu_custom_call.1} parent=47 // pred_region
          %s1336 = ssub.s32 16, 16
          %1337 = vsyncadd %s1329, %s1336
          %s1338 = smul.addr %s21, 16
          %s1339 = scalar_lea.hbm %s7, %s1338
          %s1341 = sshll.u32 %s1331, 4
          %s1342 = int_to_ptr.vmem [resolvable:$true] %s1341
          %1344 = dma.vmem_to_hbm [thread:$0]  %s1342, 16, %s1339, %s1329
        $region52: #{tpu_custom_call.1} parent=47 // pred_fallthru
          _
      $region48: #{tpu_custom_call.1} parent=5 // pred_fallthru
        _
      %p1345 = scmp.le.s32.totalorder 2, %s16
      // Predicated region
      $region53: #{tpu_custom_call.1} parent=5 // pred_check
        %p1346 = pneg %p1345
      $region54: #{tpu_custom_call.1} parent=5 // pred_check_branch
        %1348 = sbr.rel (%p1346) target = $region56
      $region55: #{tpu_custom_call.1} parent=5 // pred_region
        %s1349 = ssub.s32 %s16, 2
        // Predicated region
        $region57: #{tpu_custom_call.1} parent=55 // pred_check
          %p1350 = pneg %p197
        $region58: #{tpu_custom_call.1} parent=55 // pred_check_branch
          %1352 = sbr.rel (%p1350) target = $region60
        $region59: #{tpu_custom_call.1} parent=55 // pred_region
          %s1353 = sand.u32 %s182, 1
          %s1354 = scalar_lea.sflag [#allocation3], %s1353
          %s1355 = sand.u32 %s182, 1
          %s1356 = scalar_lea.vmem [#allocation2], %s1355
          %1357 = dma.done %s1354, 16
        $region60: #{tpu_custom_call.1} parent=55 // pred_fallthru
          _
      $region56: #{tpu_custom_call.1} parent=5 // pred_fallthru
        _
    $region6: #{tpu_custom_call.1} parent=1 // loop_footer
      %s20 = sadd.s32 1, %s16
    $region7: #{tpu_custom_call.1} parent=1 // loop_footer_branch
      %15 = sbr.rel target = $region3
    $region8: #{tpu_custom_call.1} parent=1 // loop_exit
      _
    %1358 = vsyncpa [#allocation3], 1
    %s1359 = scalar_lea.sflag [#allocation3], 1
    %1360 = vsyncpa %s1359, 1

</llo_original>
